<compile_context>
chip_gen: v7x
topology: tpu7x:2x2x1
jax: 0.10.0
libtpu: 0.0.40
codegen_flags: <defaults>
</compile_context>

<pallas_src>
import string

import jax
import jax.numpy as jnp
from jax.experimental import pallas as pl
from jax.experimental.pallas import tpu as pltpu

# --- sizes implied by the module / script ---
ALL_LETTERS = string.ascii_letters + " .,;'"
N_LETTERS = len(ALL_LETTERS)        # 57
N_HIDDEN = 128
# all_categories is empty in the original script (output_size would be 0, degenerate);
# use the canonical 18 name categories from the tutorial this script is based on.
N_CATEGORIES = 18

IPAD = 64                  # input_size 57 padded to 64
KDIM = N_HIDDEN + IPAD     # 192: fused contraction dim for [h | x]
OUTPAD = 128               # output_size 18 padded to 128 (lane-dense logit stores)
NEG_PAD = -1e30            # bias for padded logit columns -> exp() underflows to exactly 0


# ----------------------------------------------------------------------------
# Kernel: one GRU step + linear head + log-softmax for one (batch tile, t) cell.
# Weights are VMEM-resident (constant block index); the hn output block (constant
# over t) is the f32 recurrent carry; hb scratch is its bf16 mirror for the MXU.
# ----------------------------------------------------------------------------
def gru_seq_kernel(x_ref, h0_ref, wg_ref, bg_ref, wl_ref, bl_ref,
                   out_ref, hn_ref, hb_ref):
    t = pl.program_id(1)
    H = hn_ref.shape[-1]

    @pl.when(t == 0)
    def _():
        hn_ref[...] = h0_ref[...]                        # f32 carry init
        hb_ref[...] = h0_ref[...].astype(jnp.bfloat16)   # bf16 mirror for the MXU

    h = hn_ref[...]                                      # (TB, H) f32

    # Single fused gate matmul:  [h | x] @ W_big -> [r_sum | z_sum | gi_n | gh_n]
    u = jnp.concatenate([hb_ref[...], x_ref[...]], axis=-1)          # (TB, KDIM) bf16
    g = jnp.dot(u, wg_ref[...],
                preferred_element_type=jnp.float32) + bg_ref[...]    # (TB, 4H) f32

    rz = jax.nn.sigmoid(g[:, :2 * H])
    r = rz[:, :H]
    z = rz[:, H:]
    n = jnp.tanh(g[:, 2 * H:3 * H] + r * g[:, 3 * H:])
    h_new = (1.0 - z) * n + z * h                                    # (TB, H) f32

    h_new_bf = h_new.astype(jnp.bfloat16)
    hn_ref[...] = h_new                                  # carry + final hidden output
    hb_ref[...] = h_new_bf                               # bf16 carry for next step

    # Linear head + log-softmax (padded columns carry bias -1e30 -> ignored).
    logits = jnp.dot(h_new_bf, wl_ref[...],
                     preferred_element_type=jnp.float32) + bl_ref[...]   # (TB, OUTPAD)
    m = jnp.max(logits, axis=-1, keepdims=True)
    lse = jnp.log(jnp.sum(jnp.exp(logits - m), axis=-1, keepdims=True)) + m
    out_ref[...] = logits - lse


# ----------------------------------------------------------------------------
# Parameter init / one-time packing
# ----------------------------------------------------------------------------
def init_params(key, input_size, hidden_size, output_size):
    """PyTorch-style uniform(-1/sqrt(H), 1/sqrt(H)) init for nn.GRU + nn.Linear."""
    ks = jax.random.split(key, 6)
    bound = 1.0 / (hidden_size ** 0.5)
    u = lambda k, shape: jax.random.uniform(k, shape, jnp.float32, -bound, bound)
    return {
        "w_ih": u(ks[0], (3 * hidden_size, input_size)),   # rows ordered [r, z, n]
        "w_hh": u(ks[1], (3 * hidden_size, hidden_size)),
        "b_ih": u(ks[2], (3 * hidden_size,)),
        "b_hh": u(ks[3], (3 * hidden_size,)),
        "w_lin": u(ks[4], (output_size, hidden_size)),
        "b_lin": u(ks[5], (output_size,)),
    }


def prepare_params(p):
    """One-time weight prep (hoisted out of the forward path):
    pack the GRU gate weights into a single (KDIM, 4H) bf16 matrix so one MXU push
    produces [gi_r+gh_r | gi_z+gh_z | gi_n | gh_n]; pre-sum the r/z biases."""
    H = N_HIDDEN
    wih_t = p["w_ih"].T          # (57, 3H), gate order [r, z, n]
    whh_t = p["w_hh"].T          # (H,  3H)

    wg = jnp.zeros((KDIM, 4 * H), jnp.float32)
    # rows [0:H]      <- hidden-state part of u = [h | x]
    wg = wg.at[:H, 0:H].set(whh_t[:, 0:H])                 # r (h contribution)
    wg = wg.at[:H, H:2 * H].set(whh_t[:, H:2 * H])         # z (h contribution)
    wg = wg.at[:H, 3 * H:4 * H].set(whh_t[:, 2 * H:3 * H])  # gh_n
    # rows [H:H+57]   <- input part (padded to IPAD with zero rows)
    wg = wg.at[H:H + N_LETTERS, 0:H].set(wih_t[:, 0:H])             # r (x contribution)
    wg = wg.at[H:H + N_LETTERS, H:2 * H].set(wih_t[:, H:2 * H])     # z (x contribution)
    wg = wg.at[H:H + N_LETTERS, 2 * H:3 * H].set(wih_t[:, 2 * H:3 * H])  # gi_n

    bg = jnp.concatenate([
        p["b_ih"][:2 * H] + p["b_hh"][:2 * H],   # r, z bias sums
        p["b_ih"][2 * H:3 * H],                  # gi_n bias
        p["b_hh"][2 * H:3 * H],                  # gh_n bias
    ]).reshape(1, 4 * H)

    wl_t = jnp.zeros((H, OUTPAD), jnp.float32).at[:, :N_CATEGORIES].set(p["w_lin"].T)
    bl = jnp.full((1, OUTPAD), NEG_PAD, jnp.float32).at[0, :N_CATEGORIES].set(p["b_lin"])
    return {
        "wg": wg.astype(jnp.bfloat16),           # (KDIM, 4H)
        "bg": bg.astype(jnp.float32),            # (1, 4H)
        "wl_t": wl_t.astype(jnp.bfloat16),       # (H, OUTPAD)
        "bl": bl,                                # (1, OUTPAD)
    }


# ----------------------------------------------------------------------------
# Wrappers
# ----------------------------------------------------------------------------
def gru_forward(x_seq, h0, kp):
    """
    x_seq: (T, B, input_size) f32 one-hot sequence
    h0:    (num_layers=1, B, hidden)
    returns (log_probs: (T, B, output_size), hn: (1, B, hidden))
    """
    T, B, _ = x_seq.shape
    H = N_HIDDEN

    # Pad batch to a sublane multiple; tile it so M fills the MXU when large.
    B_pad = max(8, ((B + 7) // 8) * 8)
    if B_pad % 256 == 0:
        TB = 256          # v6e/v7x MXU fill target
    elif B_pad % 128 == 0:
        TB = 128          # v5e MXU fill target
    else:
        TB = B_pad
    nb = B_pad // TB

    xp = jnp.zeros((T, B_pad, IPAD), jnp.bfloat16)
    xp = xp.at[:, :B, :N_LETTERS].set(x_seq.astype(jnp.bfloat16))
    h0p = jnp.zeros((B_pad, H), jnp.float32).at[:B].set(h0.reshape(B, H))

    const = lambda b, t: (0, 0)   # VMEM-resident weights: block never changes
    out, hn = pl.pallas_call(
        gru_seq_kernel,
        out_shape=(
            jax.ShapeDtypeStruct((T, B_pad, OUTPAD), jnp.float32),
            jax.ShapeDtypeStruct((B_pad, H), jnp.float32),
        ),
        grid_spec=pltpu.PrefetchScalarGridSpec(
            num_scalar_prefetch=0,
            grid=(nb, T),
            in_specs=[
                pl.BlockSpec((None, TB, IPAD), lambda b, t: (t, b, 0)),   # x_t
                pl.BlockSpec((TB, H), lambda b, t: (b, 0)),               # h0
                pl.BlockSpec((KDIM, 4 * H), const),                        # fused gate W
                pl.BlockSpec((1, 4 * H), const),                           # fused gate b
                pl.BlockSpec((H, OUTPAD), const),                          # W_lin^T
                pl.BlockSpec((1, OUTPAD), const),                          # b_lin
            ],
            out_specs=(
                pl.BlockSpec((None, TB, OUTPAD), lambda b, t: (t, b, 0)),  # per-step logp
                pl.BlockSpec((TB, H), lambda b, t: (b, 0)),                # resident hidden
            ),
            scratch_shapes=[pltpu.VMEM((TB, H), jnp.bfloat16)],            # bf16 h mirror
        ),
        compiler_params=pltpu.CompilerParams(
            dimension_semantics=("parallel", "arbitrary")),
    )(xp, h0p, kp["wg"], kp["bg"], kp["wl_t"], kp["bl"])

    return out[:, :B, :N_CATEGORIES], hn[:B].reshape(1, B, H)


def gru_module_forward(input_x, hidden, kp):
    """Exact signature of the PyTorch module's forward:
       input: (1, input_size), hidden: (1, 1, hidden)
       returns (log_probs (1,1,output_size), hn (1,1,hidden))."""
    x_seq = input_x.reshape(1, 1, -1)
    return gru_forward(x_seq, hidden.reshape(1, 1, N_HIDDEN), kp)


# ----------------------------------------------------------------------------
# Pure-JAX reference built from the RAW (unfused, PyTorch-layout) parameters with
# the same bf16 matmul inputs — independently validates the fused weight packing.
# ----------------------------------------------------------------------------
def reference_forward(x_seq, h0, params):
    """x_seq: (T, B, input_size) f32, h0: (B, H) f32."""
    H = N_HIDDEN
    T, B, _ = x_seq.shape
    wih_t = params["w_ih"].T.astype(jnp.bfloat16)   # (I, 3H)
    whh_t = params["w_hh"].T.astype(jnp.bfloat16)   # (H, 3H)
    wl_t = params["w_lin"].T.astype(jnp.bfloat16)   # (H, O)
    x_bf = x_seq.astype(jnp.bfloat16)

    def step(h, x):
        gi = jnp.dot(x, wih_t, preferred_element_type=jnp.float32) + params["b_ih"]
        gh = jnp.dot(h.astype(jnp.bfloat16), whh_t,
                     preferred_element_type=jnp.float32) + params["b_hh"]
        r = jax.nn.sigmoid(gi[:, :H] + gh[:, :H])
        z = jax.nn.sigmoid(gi[:, H:2 * H] + gh[:, H:2 * H])
        n = jnp.tanh(gi[:, 2 * H:] + r * gh[:, 2 * H:])
        h_new = (1.0 - z) * n + z * h
        return h_new, h_new

    hT, hs = jax.lax.scan(step, h0, x_bf)                            # hs: (T, B, H)
    logits = jnp.einsum('tbh,ho->tbo', hs.astype(jnp.bfloat16), wl_t,
                        preferred_element_type=jnp.float32) + params["b_lin"]
    logp = jax.nn.log_softmax(logits, axis=-1)
    return logp, hT.reshape(1, B, H)


if __name__ == "__main__":
    key = jax.random.PRNGKey(0)
    k_param, k_data, k_h0 = jax.random.split(key, 3)

    params = init_params(k_param, N_LETTERS, N_HIDDEN, N_CATEGORIES)
    kparams = prepare_params(params)

    # --- Test 1: exact module semantics: one char ('B'), batch=1, seq=1 -------
    idx = ALL_LETTERS.find('B')
    x = jnp.zeros((1, N_LETTERS), jnp.float32).at[0, idx].set(1.0)   # lineToTensor('B').squeeze(0)
    hidden = jnp.zeros((1, 1, N_HIDDEN), jnp.float32)                # initHidden()

    out, hn = gru_module_forward(x, hidden, kparams)
    out = jax.block_until_ready(out)
    hn = jax.block_until_ready(hn)

    ref_out, ref_hn = reference_forward(x.reshape(1, 1, N_LETTERS),
                                        jnp.zeros((1, N_HIDDEN), jnp.float32), params)
    assert out.shape == (1, 1, N_CATEGORIES) and hn.shape == (1, 1, N_HIDDEN)
    assert jnp.allclose(out, ref_out, atol=1e-3), "single-step log-softmax mismatch"
    assert jnp.allclose(hn, ref_hn, atol=1e-3), "single-step hidden mismatch"

    # --- Test 2: batched multi-step path (seq loop inside the kernel) ---------
    T, B = 6, 8
    letter_idx = jax.random.randint(k_data, (T, B), 0, N_LETTERS)
    x_seq = jax.nn.one_hot(letter_idx, N_LETTERS, dtype=jnp.float32)
    h0 = jax.random.uniform(k_h0, (1, B, N_HIDDEN), jnp.float32, -0.5, 0.5)

    out2, hn2 = gru_forward(x_seq, h0, kparams)
    out2 = jax.block_until_ready(out2)
    hn2 = jax.block_until_ready(hn2)

    ref2_out, ref2_hn = reference_forward(x_seq, h0.reshape(B, N_HIDDEN), params)
    assert out2.shape == (T, B, N_CATEGORIES) and hn2.shape == (1, B, N_HIDDEN)
    assert jnp.allclose(out2, ref2_out, atol=1e-3), "sequence log-softmax mismatch"
    assert jnp.allclose(hn2, ref2_hn, atol=1e-3), "sequence hidden mismatch"

    print("KERNEL_OK")
</pallas_src>

<mosaic_0001>
module attributes {stable_mosaic.version = 11 : i64} {
  func.func @gru_seq_kernel(%arg0: i32, %arg1: i32, %arg2: memref<1x8x64xbf16, #tpu.memory_space<vmem>>, %arg3: memref<8x128xf32, #tpu.memory_space<vmem>>, %arg4: memref<192x512xbf16, #tpu.memory_space<vmem>>, %arg5: memref<1x512xf32, #tpu.memory_space<vmem>>, %arg6: memref<128x128xbf16, #tpu.memory_space<vmem>>, %arg7: memref<1x128xf32, #tpu.memory_space<vmem>>, %arg8: memref<1x8x128xf32, #tpu.memory_space<vmem>>, %arg9: memref<8x128xf32, #tpu.memory_space<vmem>>, %arg10: memref<8x128xbf16, #tpu.memory_space<vmem>>) attributes {dimension_semantics = [#tpu.dimension_semantics<parallel>, #tpu.dimension_semantics<arbitrary>], iteration_bounds = array<i64: 1, 1>, scalar_prefetch = 0 : i64, scratch_operands = 1 : i64, tpu.core_type = #tpu.core_type<tc>, window_params = [{transform_indices = @transform_0, window_bounds = array<i64: 1, 8, 64>}, {transform_indices = @transform_1, window_bounds = array<i64: 8, 128>}, {pipeline_mode = #tpu.pipeline_mode<synchronous>, transform_indices = @transform_2, window_bounds = array<i64: 192, 512>}, {pipeline_mode = #tpu.pipeline_mode<synchronous>, transform_indices = @transform_3, window_bounds = array<i64: 1, 512>}, {pipeline_mode = #tpu.pipeline_mode<synchronous>, transform_indices = @transform_4, window_bounds = array<i64: 128, 128>}, {pipeline_mode = #tpu.pipeline_mode<synchronous>, transform_indices = @transform_5, window_bounds = array<i64: 1, 128>}, {transform_indices = @transform_6, window_bounds = array<i64: 1, 8, 128>}, {transform_indices = @transform_7, window_bounds = array<i64: 8, 128>}]} {
    %c0_i32 = arith.constant 0 : i32
    %0 = arith.cmpi eq, %arg1, %c0_i32 : i32
    %1 = arith.extui %0 : i1 to i32
    %c0_i32_0 = arith.constant 0 : i32
    %2 = arith.cmpi ne, %1, %c0_i32_0 : i32
    scf.if %2 {
      %c0_27 = arith.constant 0 : index
      %c0_28 = arith.constant 0 : index
      %53 = vector.load %arg3[%c0_27, %c0_28] : memref<8x128xf32, #tpu.memory_space<vmem>>, vector<8x128xf32>
      %c0_29 = arith.constant 0 : index
      %c0_30 = arith.constant 0 : index
      %54 = vector.load %arg9[%c0_29, %c0_30] : memref<8x128xf32, #tpu.memory_space<vmem>>, vector<8x128xf32>
      tpu.vector_store %arg9[%c0_29, %c0_30], %53 {strides = array<i32>} : memref<8x128xf32, #tpu.memory_space<vmem>>, vector<8x128xf32>,
      %c0_31 = arith.constant 0 : index
      %c0_32 = arith.constant 0 : index
      %55 = vector.load %arg3[%c0_31, %c0_32] : memref<8x128xf32, #tpu.memory_space<vmem>>, vector<8x128xf32>
      %56 = arith.truncf %55 : vector<8x128xf32> to vector<8x128xbf16>
      %c0_33 = arith.constant 0 : index
      %c0_34 = arith.constant 0 : index
      %57 = vector.load %arg10[%c0_33, %c0_34] : memref<8x128xbf16, #tpu.memory_space<vmem>>, vector<8x128xbf16>
      tpu.vector_store %arg10[%c0_33, %c0_34], %56 {strides = array<i32>} : memref<8x128xbf16, #tpu.memory_space<vmem>>, vector<8x128xbf16>,
    } else {
    }
    %c0 = arith.constant 0 : index
    %c0_1 = arith.constant 0 : index
    %3 = vector.load %arg9[%c0, %c0_1] : memref<8x128xf32, #tpu.memory_space<vmem>>, vector<8x128xf32>
    %c0_2 = arith.constant 0 : index
    %c0_3 = arith.constant 0 : index
    %4 = vector.load %arg10[%c0_2, %c0_3] : memref<8x128xbf16, #tpu.memory_space<vmem>>, vector<8x128xbf16>
    %c0_4 = arith.constant 0 : index
    %c0_5 = arith.constant 0 : index
    %c0_6 = arith.constant 0 : index
    %5 = vector.load %arg2[%c0_4, %c0_5, %c0_6] : memref<1x8x64xbf16, #tpu.memory_space<vmem>>, vector<1x8x64xbf16>
    %6 = vector.shape_cast %5 : vector<1x8x64xbf16> to vector<8x64xbf16>
    %7 = tpu.concatenate %4, %6 in 1 : vector<8x128xbf16>, vector<8x64xbf16> -> vector<8x192xbf16>
    %c0_7 = arith.constant 0 : index
    %c0_8 = arith.constant 0 : index
    %8 = vector.load %arg4[%c0_7, %c0_8] : memref<192x512xbf16, #tpu.memory_space<vmem>>, vector<192x512xbf16>
    %cst = arith.constant dense<0.000000e+00> : vector<8x512xf32>
    %9 = tpu.matmul %7, %8, %cst {dimension_numbers = #tpu.dot_dimension_numbers<[1], [0], [0], [1], [0, 0, 1, 1], [], []>} : vector<8x192xbf16>, vector<192x512xbf16>, vector<8x512xf32> -> vector<8x512xf32>
    %c0_9 = arith.constant 0 : index
    %c0_10 = arith.constant 0 : index
    %10 = vector.load %arg5[%c0_9, %c0_10] : memref<1x512xf32, #tpu.memory_space<vmem>>, vector<1x512xf32>
    %11 = vector.broadcast %10 : vector<1x512xf32> to vector<8x512xf32>
    %12 = arith.addf %9, %11 : vector<8x512xf32>
    %13 = vector.extract_strided_slice %12 {offsets = [0, 0], sizes = [8, 256], strides = [1, 1]} : vector<8x512xf32> to vector<8x256xf32>
    %14 = arith.negf %13 : vector<8x256xf32>
    %15 = math.exp %14 : vector<8x256xf32>
    %cst_11 = arith.constant 1.000000e+00 : f32
    %16 = vector.broadcast %cst_11 : f32 to vector<8x256xf32>
    %17 = arith.addf %16, %15 : vector<8x256xf32>
    %18 = arith.divf %16, %17 : vector<8x256xf32>
    %19 = vector.extract_strided_slice %18 {offsets = [0, 0], sizes = [8, 128], strides = [1, 1]} : vector<8x256xf32> to vector<8x128xf32>
    %20 = vector.extract_strided_slice %18 {offsets = [0, 128], sizes = [8, 128], strides = [1, 1]} : vector<8x256xf32> to vector<8x128xf32>
    %21 = vector.extract_strided_slice %12 {offsets = [0, 256], sizes = [8, 128], strides = [1, 1]} : vector<8x512xf32> to vector<8x128xf32>
    %22 = vector.extract_strided_slice %12 {offsets = [0, 384], sizes = [8, 128], strides = [1, 1]} : vector<8x512xf32> to vector<8x128xf32>
    %23 = arith.mulf %19, %22 : vector<8x128xf32>
    %24 = arith.addf %21, %23 : vector<8x128xf32>
    %25 = math.tanh %24 : vector<8x128xf32>
    %cst_12 = arith.constant 1.000000e+00 : f32
    %26 = vector.broadcast %cst_12 : f32 to vector<8x128xf32>
    %27 = arith.subf %26, %20 : vector<8x128xf32>
    %28 = arith.mulf %27, %25 : vector<8x128xf32>
    %29 = arith.mulf %20, %3 : vector<8x128xf32>
    %30 = arith.addf %28, %29 : vector<8x128xf32>
    %31 = arith.truncf %30 : vector<8x128xf32> to vector<8x128xbf16>
    %c0_13 = arith.constant 0 : index
    %c0_14 = arith.constant 0 : index
    %32 = vector.load %arg9[%c0_13, %c0_14] : memref<8x128xf32, #tpu.memory_space<vmem>>, vector<8x128xf32>
    tpu.vector_store %arg9[%c0_13, %c0_14], %30 {strides = array<i32>} : memref<8x128xf32, #tpu.memory_space<vmem>>, vector<8x128xf32>,
    %c0_15 = arith.constant 0 : index
    %c0_16 = arith.constant 0 : index
    %33 = vector.load %arg10[%c0_15, %c0_16] : memref<8x128xbf16, #tpu.memory_space<vmem>>, vector<8x128xbf16>
    tpu.vector_store %arg10[%c0_15, %c0_16], %31 {strides = array<i32>} : memref<8x128xbf16, #tpu.memory_space<vmem>>, vector<8x128xbf16>,
    %c0_17 = arith.constant 0 : index
    %c0_18 = arith.constant 0 : index
    %34 = vector.load %arg6[%c0_17, %c0_18] : memref<128x128xbf16, #tpu.memory_space<vmem>>, vector<128x128xbf16>
    %cst_19 = arith.constant dense<0.000000e+00> : vector<8x128xf32>
    %35 = tpu.matmul %31, %34, %cst_19 {dimension_numbers = #tpu.dot_dimension_numbers<[1], [0], [0], [1], [0, 0, 1, 1], [], []>} : vector<8x128xbf16>, vector<128x128xbf16>, vector<8x128xf32> -> vector<8x128xf32>
    %c0_20 = arith.constant 0 : index
    %c0_21 = arith.constant 0 : index
    %36 = vector.load %arg7[%c0_20, %c0_21] : memref<1x128xf32, #tpu.memory_space<vmem>>, vector<1x128xf32>
    %37 = vector.broadcast %36 : vector<1x128xf32> to vector<8x128xf32>
    %38 = arith.addf %35, %37 : vector<8x128xf32>
    %cst_22 = arith.constant dense<0xFF800000> : vector<8xf32>
    %39 = vector.multi_reduction <maximumf>, %38, %cst_22 [1] : vector<8x128xf32> to vector<8xf32>
    %40 = vector.shape_cast %39 : vector<8xf32> to vector<8x1xf32>
    %41 = vector.broadcast %40 : vector<8x1xf32> to vector<8x128xf32>
    %42 = arith.subf %38, %41 : vector<8x128xf32>
    %43 = math.exp %42 : vector<8x128xf32>
    %cst_23 = arith.constant dense<0.000000e+00> : vector<8xf32>
    %44 = vector.multi_reduction <add>, %43, %cst_23 [1] : vector<8x128xf32> to vector<8xf32>
    %45 = vector.shape_cast %44 : vector<8xf32> to vector<8x1xf32>
    %46 = math.log %45 : vector<8x1xf32>
    %47 = arith.addf %46, %40 : vector<8x1xf32>
    %48 = vector.broadcast %47 : vector<8x1xf32> to vector<8x128xf32>
    %49 = arith.subf %38, %48 : vector<8x128xf32>
    %c0_24 = arith.constant 0 : index
    %c0_25 = arith.constant 0 : index
    %c0_26 = arith.constant 0 : index
    %50 = vector.load %arg8[%c0_24, %c0_25, %c0_26] : memref<1x8x128xf32, #tpu.memory_space<vmem>>, vector<1x8x128xf32>
    %51 = vector.shape_cast %50 : vector<1x8x128xf32> to vector<8x128xf32>
    %52 = vector.shape_cast %49 : vector<8x128xf32> to vector<1x8x128xf32>
    tpu.vector_store %arg8[%c0_24, %c0_25, %c0_26], %52 {strides = array<i32>} : memref<1x8x128xf32, #tpu.memory_space<vmem>>, vector<1x8x128xf32>,
    return
  }
  func.func @transform_0(%arg0: i32, %arg1: i32) -> (i32, i32, i32) {
    %c0_i32 = arith.constant 0 : i32
    %c0_i32_0 = arith.constant 0 : i32
    return %arg1, %arg0, %c0_i32 : i32, i32, i32
  }
  func.func @transform_1(%arg0: i32, %arg1: i32) -> (i32, i32) {
    %c0_i32 = arith.constant 0 : i32
    %c0_i32_0 = arith.constant 0 : i32
    return %arg0, %c0_i32 : i32, i32
  }
  func.func @transform_2(%arg0: i32, %arg1: i32) -> (i32, i32) {
    %c0_i32 = arith.constant 0 : i32
    %c0_i32_0 = arith.constant 0 : i32
    %c0_i32_1 = arith.constant 0 : i32
    return %c0_i32, %c0_i32_0 : i32, i32
  }
  func.func @transform_3(%arg0: i32, %arg1: i32) -> (i32, i32) {
    %c0_i32 = arith.constant 0 : i32
    %c0_i32_0 = arith.constant 0 : i32
    %c0_i32_1 = arith.constant 0 : i32
    return %c0_i32, %c0_i32_0 : i32, i32
  }
  func.func @transform_4(%arg0: i32, %arg1: i32) -> (i32, i32) {
    %c0_i32 = arith.constant 0 : i32
    %c0_i32_0 = arith.constant 0 : i32
    %c0_i32_1 = arith.constant 0 : i32
    return %c0_i32, %c0_i32_0 : i32, i32
  }
  func.func @transform_5(%arg0: i32, %arg1: i32) -> (i32, i32) {
    %c0_i32 = arith.constant 0 : i32
    %c0_i32_0 = arith.constant 0 : i32
    %c0_i32_1 = arith.constant 0 : i32
    return %c0_i32, %c0_i32_0 : i32, i32
  }
  func.func @transform_6(%arg0: i32, %arg1: i32) -> (i32, i32, i32) {
    %c0_i32 = arith.constant 0 : i32
    %c0_i32_0 = arith.constant 0 : i32
    return %arg1, %arg0, %c0_i32 : i32, i32, i32
  }
  func.func @transform_7(%arg0: i32, %arg1: i32) -> (i32, i32) {
    %c0_i32 = arith.constant 0 : i32
    %c0_i32_0 = arith.constant 0 : i32
    return %arg0, %c0_i32 : i32, i32
  }
}

</mosaic_0001>

<llo_original>
// kernel: tpu_custom_call.1
$region0: #{tpu_custom_call.1}
  #allocation0 [shape = 'u32[]', space=smem, size = 0x4, offset = 0x4, fixed_abs, tag = 'smem constant byte address 0x4 - core index']
  #allocation1 [shape = 'u32[144,128]{1,0:T(1,128)}', space=vmem, size = 0x12000, scoped, tag = 'internal scratch']
  #allocation2 [shape = 'bf16[8,128]{1,0:T(8,128)(2,1)}', space=vmem, size = 0x800, scoped, tag = 'scratch operand']
  %s0 = inlined_call_operand.hbm [shape: bf16[1,8,64], index: 0, kind: input, shape index: {}]
  %s1 = inlined_call_operand.hbm [shape: f32[8,128], index: 1, kind: input, shape index: {}]
  %s2 = inlined_call_operand.hbm [shape: bf16[192,512], index: 2, kind: input, shape index: {}]
  %s3 = inlined_call_operand.vmem [shape: f32[1,512], index: 3, kind: input, shape index: {}]
  %s4 = inlined_call_operand.hbm [shape: bf16[128,128], index: 4, kind: input, shape index: {}]
  %s5 = inlined_call_operand.vmem [shape: f32[1,128], index: 5, kind: input, shape index: {}]
  %s6 = inlined_call_operand.hbm [shape: f32[1,8,128], index: 6, kind: output, shape index: {0}]
  %s7 = inlined_call_operand.hbm [shape: f32[8,128], index: 7, kind: output, shape index: {1}]
  %8 = xla_tuple %s6, %s7
  %s9 = sld [smem:[#allocation0]]
  $region62: #{tpu_custom_call.1} parent=0
    _
  %s11 = ssub.s32 1, %s9
  %s12 = scalar_select 0, %s11, %s9
  $region1: #{tpu_custom_call.1} parent=0
    #allocation3 [shape = 'u8[2048]{0}', space=vmem, size = 0x800, scoped, tag = 'input window, operand 0, single buffered']
    #allocation4 [shape = 's32[1]{0}', space=sflag, size = 0x4, scoped, tag = 'scoped memory for tpu_custom_call.1']
    #allocation5 [shape = 's32[1]{0}', space=sflag, size = 0x4, scoped, tag = 'scoped memory for tpu_custom_call.1']
    #allocation6 [shape = 'u8[4096]{0}', space=vmem, size = 0x1000, scoped, tag = 'input window, operand 1, single buffered']
    #allocation7 [shape = 's32[1]{0}', space=sflag, size = 0x4, scoped, tag = 'scoped memory for tpu_custom_call.1']
    #allocation8 [shape = 'u8[196608]{0}', space=vmem, size = 0x30000, scoped, tag = 'input window, operand 2, single buffered']
    #allocation9 [shape = 'u8[32768]{0}', space=vmem, size = 0x8000, scoped, tag = 'input window, operand 4, single buffered']
    #allocation10 [shape = 's32[1]{0}', space=sflag, size = 0x4, scoped, tag = 'scoped memory for tpu_custom_call.1']
    #allocation11 [shape = 'u8[4096]{0}', space=vmem, size = 0x1000, scoped, tag = 'output window, operand 0, single buffered']
    #allocation12 [shape = 'u8[4096]{0}', space=vmem, size = 0x1000, scoped, tag = 'output window, operand 1, single buffered']
    #allocation13 [shape = 's32[1]{0}', space=sflag, size = 0x4, scoped, tag = 'scoped memory for tpu_custom_call.1']
    %13 = vsyncpa [#allocation4], 0
    %14 = vsyncpa [#allocation7], 0
    %15 = vsyncpa [#allocation10], 0
    %16 = vsyncpa [#allocation5], 0
    %17 = vsyncpa [#allocation13], 0
    // Predicated region
    $region2: #{tpu_custom_call.1} parent=1 // pred_check
      _
    $region3: #{tpu_custom_call.1} parent=1 // pred_check_branch
      %19 = sbr.rel (0) target = $region5
    $region4: #{tpu_custom_call.1} parent=1 // pred_region
      %s21 = ssub.s32 64, 64
      %22 = vsyncadd [#allocation4], %s21
      %s24 = sshll.u32 [#allocation3], 4
      %s25 = int_to_ptr.vmem [resolvable:$true] %s24
      %27 = dma.hbm_to_vmem [thread:$0]  %s0, 64, %s25, [#allocation4]
    $region5: #{tpu_custom_call.1} parent=1 // pred_fallthru
      _
    // Predicated region
    $region6: #{tpu_custom_call.1} parent=1 // pred_check
      _
    $region7: #{tpu_custom_call.1} parent=1 // pred_check_branch
      %29 = sbr.rel (0) target = $region9
    $region8: #{tpu_custom_call.1} parent=1 // pred_region
      %s31 = ssub.s32 128, 128
      %32 = vsyncadd [#allocation7], %s31
      %s34 = sshll.u32 [#allocation6], 4
      %s35 = int_to_ptr.vmem [resolvable:$true] %s34
      %37 = dma.hbm_to_vmem [thread:$0]  %s1, 128, %s35, [#allocation7]
    $region9: #{tpu_custom_call.1} parent=1 // pred_fallthru
      _
    // Predicated region
    $region10: #{tpu_custom_call.1} parent=1 // pred_check
      _
    $region11: #{tpu_custom_call.1} parent=1 // pred_check_branch
      %39 = sbr.rel (0) target = $region13
    $region12: #{tpu_custom_call.1} parent=1 // pred_region
      %s41 = ssub.s32 6144, 6144
      %42 = vsyncadd [#allocation7], %s41
      %s43 = sshll.u32 [#allocation8], 4
      %s44 = int_to_ptr.vmem [resolvable:$true] %s43
      %49 = dma.hbm_to_vmem [thread:$0]  %s2, 6144, %s44, [#allocation7], 256, 256, 16
    $region13: #{tpu_custom_call.1} parent=1 // pred_fallthru
      _
    // Predicated region
    $region14: #{tpu_custom_call.1} parent=1 // pred_check
      _
    $region15: #{tpu_custom_call.1} parent=1 // pred_check_branch
      %51 = sbr.rel (0) target = $region17
    $region16: #{tpu_custom_call.1} parent=1 // pred_region
      _
    $region17: #{tpu_custom_call.1} parent=1 // pred_fallthru
      _
    // Predicated region
    $region18: #{tpu_custom_call.1} parent=1 // pred_check
      _
    $region19: #{tpu_custom_call.1} parent=1 // pred_check_branch
      %53 = sbr.rel (0) target = $region21
    $region20: #{tpu_custom_call.1} parent=1 // pred_region
      %s55 = ssub.s32 1024, 1024
      %56 = vsyncadd [#allocation10], %s55
      %s57 = sshll.u32 [#allocation9], 4
      %s58 = int_to_ptr.vmem [resolvable:$true] %s57
      %63 = dma.hbm_to_vmem [thread:$0]  %s4, 1024, %s58, [#allocation10], 64, 64, 4
    $region21: #{tpu_custom_call.1} parent=1 // pred_fallthru
      _
    // Predicated region
    $region22: #{tpu_custom_call.1} parent=1 // pred_check
      _
    $region23: #{tpu_custom_call.1} parent=1 // pred_check_branch
      %65 = sbr.rel (0) target = $region25
    $region24: #{tpu_custom_call.1} parent=1 // pred_region
      _
    $region25: #{tpu_custom_call.1} parent=1 // pred_fallthru
      _
    // Predicated region
    $region26: #{tpu_custom_call.1} parent=1 // pred_check
      _
    $region27: #{tpu_custom_call.1} parent=1 // pred_check_branch
      %67 = sbr.rel (0) target = $region29
    $region28: #{tpu_custom_call.1} parent=1 // pred_region
      %68 = dma.done [#allocation4], 64
    $region29: #{tpu_custom_call.1} parent=1 // pred_fallthru
      _
    // Predicated region
    $region30: #{tpu_custom_call.1} parent=1 // pred_check
      _
    $region31: #{tpu_custom_call.1} parent=1 // pred_check_branch
      %70 = sbr.rel (0) target = $region33
    $region32: #{tpu_custom_call.1} parent=1 // pred_region
      %71 = dma.done [#allocation7], 128
    $region33: #{tpu_custom_call.1} parent=1 // pred_fallthru
      _
    // Predicated region
    $region34: #{tpu_custom_call.1} parent=1 // pred_check
      _
    $region35: #{tpu_custom_call.1} parent=1 // pred_check_branch
      %73 = sbr.rel (0) target = $region37
    $region36: #{tpu_custom_call.1} parent=1 // pred_region
      %74 = dma.done [#allocation7], 6144
    $region37: #{tpu_custom_call.1} parent=1 // pred_fallthru
      _
    // Predicated region
    $region38: #{tpu_custom_call.1} parent=1 // pred_check
      _
    $region39: #{tpu_custom_call.1} parent=1 // pred_check_branch
      %76 = sbr.rel (0) target = $region41
    $region40: #{tpu_custom_call.1} parent=1 // pred_region
      %77 = dma.done [#allocation10], 1024
    $region41: #{tpu_custom_call.1} parent=1 // pred_fallthru
      _
    %p79 = scmp.eq.s32.totalorder 0, 0
    // Predicated region
    $region42: #{tpu_custom_call.1} parent=1 // pred_check
      %p80 = pneg %p79
    $region43: #{tpu_custom_call.1} parent=1 // pred_check_branch
      %82 = sbr.rel (%p80) target = $region45
    $region44: #{tpu_custom_call.1} parent=1 // pred_region
      %v83 = vld [vmem:[#allocation6] sm:$0xff]
      %84 = vst [vmem:[#allocation12] sm:$0xff] %v83
      %v85 = vld [vmem:[#allocation6] sm:$0xff]
      %v86 = vpack.c.bf16 %v85, %v85
      %87 = vst [vmem:[#allocation2] sm:$0xf] %v86
    $region45: #{tpu_custom_call.1} parent=1 // pred_fallthru
      _
    %v88 = vld [vmem:[#allocation12] sm:$0xff]
    %v89 = vld [vmem:[#allocation2] sm:$0xf]
    %v90 = vld [vmem:[#allocation3] sm:$0xf]
    %v91 = vld [vmem:[#allocation8] sm:$0xff]
    %v92 = vld [vmem:[#allocation8 + $0x8] sm:$0xff]
    %v93 = vld [vmem:[#allocation8 + $0x10] sm:$0xff]
    %v94 = vld [vmem:[#allocation8 + $0x18] sm:$0xff]
    %v95 = vld [vmem:[#allocation8 + $0x20] sm:$0xff]
    %v96 = vld [vmem:[#allocation8 + $0x28] sm:$0xff]
    %v97 = vld [vmem:[#allocation8 + $0x30] sm:$0xff]
    %v98 = vld [vmem:[#allocation8 + $0x38] sm:$0xff]
    %v99 = vld [vmem:[#allocation8 + $0x40] sm:$0xff]
    %v100 = vld [vmem:[#allocation8 + $0x48] sm:$0xff]
    %v101 = vld [vmem:[#allocation8 + $0x50] sm:$0xff]
    %v102 = vld [vmem:[#allocation8 + $0x58] sm:$0xff]
    %v103 = vld [vmem:[#allocation8 + $0x60] sm:$0xff]
    %v104 = vld [vmem:[#allocation8 + $0x68] sm:$0xff]
    %v105 = vld [vmem:[#allocation8 + $0x70] sm:$0xff]
    %v106 = vld [vmem:[#allocation8 + $0x78] sm:$0xff]
    %v107 = vld [vmem:[#allocation8 + $0x80] sm:$0xff]
    %v108 = vld [vmem:[#allocation8 + $0x88] sm:$0xff]
    %v109 = vld [vmem:[#allocation8 + $0x90] sm:$0xff]
    %v110 = vld [vmem:[#allocation8 + $0x98] sm:$0xff]
    %v111 = vld [vmem:[#allocation8 + $0xa0] sm:$0xff]
    %v112 = vld [vmem:[#allocation8 + $0xa8] sm:$0xff]
    %v113 = vld [vmem:[#allocation8 + $0xb0] sm:$0xff]
    %v114 = vld [vmem:[#allocation8 + $0xb8] sm:$0xff]
    %v115 = vld [vmem:[#allocation8 + $0xc0] sm:$0xff]
    %v116 = vld [vmem:[#allocation8 + $0xc8] sm:$0xff]
    %v117 = vld [vmem:[#allocation8 + $0xd0] sm:$0xff]
    %v118 = vld [vmem:[#allocation8 + $0xd8] sm:$0xff]
    %v119 = vld [vmem:[#allocation8 + $0xe0] sm:$0xff]
    %v120 = vld [vmem:[#allocation8 + $0xe8] sm:$0xff]
    %v121 = vld [vmem:[#allocation8 + $0xf0] sm:$0xff]
    %v122 = vld [vmem:[#allocation8 + $0xf8] sm:$0xff]
    %v123 = vld [vmem:[#allocation8 + $0x100] sm:$0xff]
    %v124 = vld [vmem:[#allocation8 + $0x108] sm:$0xff]
    %v125 = vld [vmem:[#allocation8 + $0x110] sm:$0xff]
    %v126 = vld [vmem:[#allocation8 + $0x118] sm:$0xff]
    %v127 = vld [vmem:[#allocation8 + $0x120] sm:$0xff]
    %v128 = vld [vmem:[#allocation8 + $0x128] sm:$0xff]
    %v129 = vld [vmem:[#allocation8 + $0x130] sm:$0xff]
    %v130 = vld [vmem:[#allocation8 + $0x138] sm:$0xff]
    %v131 = vld [vmem:[#allocation8 + $0x140] sm:$0xff]
    %v132 = vld [vmem:[#allocation8 + $0x148] sm:$0xff]
    %v133 = vld [vmem:[#allocation8 + $0x150] sm:$0xff]
    %v134 = vld [vmem:[#allocation8 + $0x158] sm:$0xff]
    %v135 = vld [vmem:[#allocation8 + $0x160] sm:$0xff]
    %v136 = vld [vmem:[#allocation8 + $0x168] sm:$0xff]
    %v137 = vld [vmem:[#allocation8 + $0x170] sm:$0xff]
    %v138 = vld [vmem:[#allocation8 + $0x178] sm:$0xff]
    %v139 = vld [vmem:[%s3] sm:$0xf]
    %v141 = vlaneseq
    %v142 = vshrl.u32 %v141, 7
    %v143 = vsub.s32 0, %v142
    %v144 = vrot.slane %v139, %v143
    %v145 = vlaneseq
    %v146 = vshrl.u32 %v145, 7
    %v147 = vsub.s32 1, %v146
    %v148 = vrot.slane %v139, %v147
    %v149 = vlaneseq
    %v150 = vshrl.u32 %v149, 7
    %v151 = vsub.s32 2, %v150
    %v152 = vrot.slane %v139, %v151
    %v153 = vlaneseq
    %v154 = vshrl.u32 %v153, 7
    %v155 = vsub.s32 3, %v154
    %v156 = vrot.slane %v139, %v155
    %v209 = vunpack.c.l.b16 %v91
    %v210 = vunpack.c.h.b16 %v91
    %v211 = vunpack.c.l.b16 %v92
    %v212 = vunpack.c.h.b16 %v92
    %v213 = vunpack.c.l.b16 %v93
    %v214 = vunpack.c.h.b16 %v93
    %v215 = vunpack.c.l.b16 %v94
    %v216 = vunpack.c.h.b16 %v94
    %v217 = vunpack.c.l.b16 %v95
    %v218 = vunpack.c.h.b16 %v95
    %v219 = vunpack.c.l.b16 %v96
    %v220 = vunpack.c.h.b16 %v96
    %v221 = vunpack.c.l.b16 %v97
    %v222 = vunpack.c.h.b16 %v97
    %v223 = vunpack.c.l.b16 %v98
    %v224 = vunpack.c.h.b16 %v98
    %v225 = vunpack.c.l.b16 %v99
    %v226 = vunpack.c.h.b16 %v99
    %v227 = vunpack.c.l.b16 %v100
    %v228 = vunpack.c.h.b16 %v100
    %v229 = vunpack.c.l.b16 %v101
    %v230 = vunpack.c.h.b16 %v101
    %v231 = vunpack.c.l.b16 %v102
    %v232 = vunpack.c.h.b16 %v102
    %v233 = vunpack.c.l.b16 %v103
    %v234 = vunpack.c.h.b16 %v103
    %v235 = vunpack.c.l.b16 %v104
    %v236 = vunpack.c.h.b16 %v104
    %v237 = vunpack.c.l.b16 %v105
    %v238 = vunpack.c.h.b16 %v105
    %v239 = vunpack.c.l.b16 %v106
    %v240 = vunpack.c.h.b16 %v106
    %v241 = vunpack.c.l.b16 %v107
    %v242 = vunpack.c.h.b16 %v107
    %v243 = vunpack.c.l.b16 %v108
    %v244 = vunpack.c.h.b16 %v108
    %v245 = vunpack.c.l.b16 %v109
    %v246 = vunpack.c.h.b16 %v109
    %v247 = vunpack.c.l.b16 %v110
    %v248 = vunpack.c.h.b16 %v110
    %v249 = vunpack.c.l.b16 %v111
    %v250 = vunpack.c.h.b16 %v111
    %v251 = vunpack.c.l.b16 %v112
    %v252 = vunpack.c.h.b16 %v112
    %v253 = vunpack.c.l.b16 %v113
    %v254 = vunpack.c.h.b16 %v113
    %v255 = vunpack.c.l.b16 %v114
    %v256 = vunpack.c.h.b16 %v114
    %v257 = vunpack.c.l.b16 %v115
    %v258 = vunpack.c.h.b16 %v115
    %v259 = vunpack.c.l.b16 %v116
    %v260 = vunpack.c.h.b16 %v116
    %v261 = vunpack.c.l.b16 %v117
    %v262 = vunpack.c.h.b16 %v117
    %v263 = vunpack.c.l.b16 %v118
    %v264 = vunpack.c.h.b16 %v118
    %v265 = vunpack.c.l.b16 %v119
    %v266 = vunpack.c.h.b16 %v119
    %v267 = vunpack.c.l.b16 %v120
    %v268 = vunpack.c.h.b16 %v120
    %v269 = vunpack.c.l.b16 %v121
    %v270 = vunpack.c.h.b16 %v121
    %v271 = vunpack.c.l.b16 %v122
    %v272 = vunpack.c.h.b16 %v122
    %v273 = vunpack.c.l.b16 %v123
    %v274 = vunpack.c.h.b16 %v123
    %v275 = vunpack.c.l.b16 %v124
    %v276 = vunpack.c.h.b16 %v124
    %v277 = vunpack.c.l.b16 %v125
    %v278 = vunpack.c.h.b16 %v125
    %v279 = vunpack.c.l.b16 %v126
    %v280 = vunpack.c.h.b16 %v126
    %v281 = vunpack.c.l.b16 %v127
    %v282 = vunpack.c.h.b16 %v127
    %v283 = vunpack.c.l.b16 %v128
    %v284 = vunpack.c.h.b16 %v128
    %v285 = vunpack.c.l.b16 %v129
    %v286 = vunpack.c.h.b16 %v129
    %v287 = vunpack.c.l.b16 %v130
    %v288 = vunpack.c.h.b16 %v130
    %v289 = vunpack.c.l.b16 %v131
    %v290 = vunpack.c.h.b16 %v131
    %v291 = vunpack.c.l.b16 %v132
    %v292 = vunpack.c.h.b16 %v132
    %v293 = vunpack.c.l.b16 %v133
    %v294 = vunpack.c.h.b16 %v133
    %v295 = vunpack.c.l.b16 %v134
    %v296 = vunpack.c.h.b16 %v134
    %v297 = vunpack.c.l.b16 %v135
    %v298 = vunpack.c.h.b16 %v135
    %v299 = vunpack.c.l.b16 %v136
    %v300 = vunpack.c.h.b16 %v136
    %v301 = vunpack.c.l.b16 %v137
    %v302 = vunpack.c.h.b16 %v137
    %v303 = vunpack.c.l.b16 %v138
    %v304 = vunpack.c.h.b16 %v138
    %v305 = vpack.c.b16 %v213, %v209
    %v306 = vpack.c.b16 %v214, %v210
    %v307 = vpack.c.b16 %v215, %v211
    %v308 = vpack.c.b16 %v216, %v212
    %v309 = vpack.c.b16 %v221, %v217
    %v310 = vpack.c.b16 %v222, %v218
    %v311 = vpack.c.b16 %v223, %v219
    %v312 = vpack.c.b16 %v224, %v220
    %v313 = vpack.c.b16 %v229, %v225
    %v314 = vpack.c.b16 %v230, %v226
    %v315 = vpack.c.b16 %v231, %v227
    %v316 = vpack.c.b16 %v232, %v228
    %v317 = vpack.c.b16 %v237, %v233
    %v318 = vpack.c.b16 %v238, %v234
    %v319 = vpack.c.b16 %v239, %v235
    %v320 = vpack.c.b16 %v240, %v236
    %v321 = vpack.c.b16 %v245, %v241
    %v322 = vpack.c.b16 %v246, %v242
    %v323 = vpack.c.b16 %v247, %v243
    %v324 = vpack.c.b16 %v248, %v244
    %v325 = vpack.c.b16 %v253, %v249
    %v326 = vpack.c.b16 %v254, %v250
    %v327 = vpack.c.b16 %v255, %v251
    %v328 = vpack.c.b16 %v256, %v252
    %v329 = vpack.c.b16 %v261, %v257
    %v330 = vpack.c.b16 %v262, %v258
    %v331 = vpack.c.b16 %v263, %v259
    %v332 = vpack.c.b16 %v264, %v260
    %v333 = vpack.c.b16 %v269, %v265
    %v334 = vpack.c.b16 %v270, %v266
    %v335 = vpack.c.b16 %v271, %v267
    %v336 = vpack.c.b16 %v272, %v268
    %v337 = vpack.c.b16 %v277, %v273
    %v338 = vpack.c.b16 %v278, %v274
    %v339 = vpack.c.b16 %v279, %v275
    %v340 = vpack.c.b16 %v280, %v276
    %v341 = vpack.c.b16 %v285, %v281
    %v342 = vpack.c.b16 %v286, %v282
    %v343 = vpack.c.b16 %v287, %v283
    %v344 = vpack.c.b16 %v288, %v284
    %v345 = vpack.c.b16 %v293, %v289
    %v346 = vpack.c.b16 %v294, %v290
    %v347 = vpack.c.b16 %v295, %v291
    %v348 = vpack.c.b16 %v296, %v292
    %v349 = vpack.c.b16 %v301, %v297
    %v350 = vpack.c.b16 %v302, %v298
    %v351 = vpack.c.b16 %v303, %v299
    %v352 = vpack.c.b16 %v304, %v300
    %vm401 = vcmask 523264
    %v403 = vsel %vm401, %v90, 0
    %405 = vmatprep.subr.bf16.mxu0 %v306
    %406 = vmatpush1.bf16.msra.mxu0 %v305
    %407 = vmatprep.subr.bf16.mxu0 %v310
    %408 = vmatpush1.bf16.msra.mxu0 %v309
    %409 = vmatprep.subr.bf16.mxu0 %v314
    %410 = vmatpush1.bf16.msra.mxu0 %v313
    %411 = vmatprep.subr.bf16.mxu0 %v318
    %412 = vmatpush1.bf16.msra.mxu0 %v317
    %413 = vmatprep.subr.bf16.mxu0 %v322
    %414 = vmatpush1.bf16.msra.mxu0 %v321
    %415 = vmatprep.subr.bf16.mxu0 %v326
    %416 = vmatpush1.bf16.msra.mxu0 %v325
    %417 = vmatprep.subr.bf16.mxu0 %v330
    %418 = vmatpush1.bf16.msra.mxu0 %v329
    %419 = vmatprep.subr.bf16.mxu0 %v334
    %420 = vmatpush1.bf16.msra.mxu0 %v333
    %421 = vmatprep.subr.bf16.mxu0 %v338
    %422 = vmatpush1.bf16.msra.mxu0 %v337
    %423 = vmatprep.subr.bf16.mxu0 %v342
    %424 = vmatpush1.bf16.msra.mxu0 %v341
    %425 = vmatprep.subr.bf16.mxu0 %v346
    %426 = vmatpush1.bf16.msra.mxu0 %v345
    %427 = vmatprep.subr.bf16.mxu0 %v350
    %428 = vmatpush1.bf16.msra.mxu0 %v349
    %429 = vmatprep.subr.bf16.mxu0 0
    %430 = vmatpush1.bf16.msra.mxu0 0
    %431 = vmatprep.subr.bf16.mxu0 0
    %432 = vmatpush1.bf16.msra.mxu0 0
    %433 = vmatprep.subr.bf16.mxu0 0
    %434 = vmatpush1.bf16.msra.mxu0 0
    %435 = vmatprep.subr.bf16.mxu0 0
    %436 = vmatpush1.bf16.msra.mxu0 0
    %437 = vmatprep.mubr.bf16.mxu0 %v403
    %438 = vmatmul.mubr.bf16.gmra.mrb[0].mxu0 %v89
    %v439 = vpop.f32.mrb[0].mxu0
    %v440 = vadd.f32 %v144, %v439
    %v441 = vpop.f32.mrb[0].mxu0
    %v442 = vadd.f32 %v148, %v441
    %v443 = vpop.f32.mrb[0].mxu0
    %v444 = vpop.f32.mrb[0].mxu0
    %445 = vdwg.mxu0
    %446 = vmatprep.subr.bf16.mxu0 %v308
    %447 = vmatpush1.bf16.msra.mxu0 %v307
    %448 = vmatprep.subr.bf16.mxu0 %v312
    %449 = vmatpush1.bf16.msra.mxu0 %v311
    %450 = vmatprep.subr.bf16.mxu0 %v316
    %451 = vmatpush1.bf16.msra.mxu0 %v315
    %452 = vmatprep.subr.bf16.mxu0 %v320
    %453 = vmatpush1.bf16.msra.mxu0 %v319
    %454 = vmatprep.subr.bf16.mxu0 %v324
    %455 = vmatpush1.bf16.msra.mxu0 %v323
    %456 = vmatprep.subr.bf16.mxu0 %v328
    %457 = vmatpush1.bf16.msra.mxu0 %v327
    %458 = vmatprep.subr.bf16.mxu0 %v332
    %459 = vmatpush1.bf16.msra.mxu0 %v331
    %460 = vmatprep.subr.bf16.mxu0 %v336
    %461 = vmatpush1.bf16.msra.mxu0 %v335
    %462 = vmatprep.subr.bf16.mxu0 %v340
    %463 = vmatpush1.bf16.msra.mxu0 %v339
    %464 = vmatprep.subr.bf16.mxu0 %v344
    %465 = vmatpush1.bf16.msra.mxu0 %v343
    %466 = vmatprep.subr.bf16.mxu0 %v348
    %467 = vmatpush1.bf16.msra.mxu0 %v347
    %468 = vmatprep.subr.bf16.mxu0 %v352
    %469 = vmatpush1.bf16.msra.mxu0 %v351
    %470 = vmatprep.subr.bf16.mxu0 0
    %471 = vmatpush1.bf16.msra.mxu0 0
    %472 = vmatprep.subr.bf16.mxu0 0
    %473 = vmatpush1.bf16.msra.mxu0 0
    %474 = vmatprep.subr.bf16.mxu0 0
    %475 = vmatpush1.bf16.msra.mxu0 0
    %476 = vmatprep.subr.bf16.mxu0 0
    %477 = vmatpush1.bf16.msra.mxu0 0
    %478 = vmatprep.mubr.bf16.mxu0 %v403
    %479 = vmatmul.mubr.bf16.gmra.mrb[0].mxu0 %v89
    %v480 = vpop.f32.mrb[0].mxu0
    %v481 = vadd.f32 %v152, %v480
    %v482 = vpop.f32.mrb[0].mxu0
    %v483 = vadd.f32 %v156, %v482
    %v484 = vpop.f32.mrb[0].mxu0
    %v485 = vpop.f32.mrb[0].mxu0
    %486 = vdwg.mxu0
    %v487 = vxor.u32 %v440, 2147483648
    %v488 = vxor.u32 %v442, 2147483648
    %v489 = vmul.f32 %v487, 1.442695
    %v490 = vpow.pop %v489
    %v491 = vmul.f32 %v488, 1.442695
    %v492 = vpow.pop %v491
    %v493 = vadd.f32 %v490, 1.0
    %v494 = vadd.f32 %v492, 1.0
    %v495 = vrcp.pop %v493
    %v496 = vmul.f32 1.0, %v495
    %v497 = vrcp.pop %v494
    %v498 = vmul.f32 1.0, %v497
    %v499 = vmul.f32 %v496, %v483
    %v500 = vadd.f32 %v481, %v499
    %v501 = vtanh.pop %v500
    %v502 = vsub.f32 1.0, %v498
    %v503 = vmul.f32 %v502, %v501
    %v504 = vmul.f32 %v498, %v88
    %v505 = vadd.f32 %v503, %v504
    %v506 = vpack.c.bf16 %v505, %v505
    %507 = vst [vmem:[#allocation12] sm:$0xff] %v505
    %508 = vst [vmem:[#allocation2] sm:$0xf] %v506
    %v509 = vld [vmem:[#allocation9] sm:$0xf]
    %v510 = vld [vmem:[#allocation9 + $0x4] sm:$0xf]
    %v511 = vld [vmem:[#allocation9 + $0x8] sm:$0xf]
    %v512 = vld [vmem:[#allocation9 + $0xc] sm:$0xf]
    %v513 = vld [vmem:[#allocation9 + $0x10] sm:$0xf]
    %v514 = vld [vmem:[#allocation9 + $0x14] sm:$0xf]
    %v515 = vld [vmem:[#allocation9 + $0x18] sm:$0xf]
    %v516 = vld [vmem:[#allocation9 + $0x1c] sm:$0xf]
    %v517 = vld [vmem:[#allocation9 + $0x20] sm:$0xf]
    %v518 = vld [vmem:[#allocation9 + $0x24] sm:$0xf]
    %v519 = vld [vmem:[#allocation9 + $0x28] sm:$0xf]
    %v520 = vld [vmem:[#allocation9 + $0x2c] sm:$0xf]
    %v521 = vld [vmem:[#allocation9 + $0x30] sm:$0xf]
    %v522 = vld [vmem:[#allocation9 + $0x34] sm:$0xf]
    %v523 = vld [vmem:[#allocation9 + $0x38] sm:$0xf]
    %v524 = vld [vmem:[#allocation9 + $0x3c] sm:$0xf]
    %v525 = vld [vmem:[%s5] sm:$0x1]
    %v527 = vlaneseq
    %v528 = vshrl.u32 %v527, 7
    %v529 = vsub.s32 0, %v528
    %v530 = vrot.slane %v525, %v529
    %v548 = vunpack.c.l.b16 %v509
    %v549 = vunpack.c.l.b16 %v510
    %v550 = vunpack.c.l.b16 %v511
    %v551 = vunpack.c.l.b16 %v512
    %v552 = vunpack.c.l.b16 %v513
    %v553 = vunpack.c.l.b16 %v514
    %v554 = vunpack.c.l.b16 %v515
    %v555 = vunpack.c.l.b16 %v516
    %v556 = vunpack.c.l.b16 %v517
    %v557 = vunpack.c.l.b16 %v518
    %v558 = vunpack.c.l.b16 %v519
    %v559 = vunpack.c.l.b16 %v520
    %v560 = vunpack.c.l.b16 %v521
    %v561 = vunpack.c.l.b16 %v522
    %v562 = vunpack.c.l.b16 %v523
    %v563 = vunpack.c.l.b16 %v524
    %v564 = vpack.c.b16 %v549, %v548
    %v565 = vpack.c.b16 %v551, %v550
    %v566 = vpack.c.b16 %v553, %v552
    %v567 = vpack.c.b16 %v555, %v554
    %v568 = vpack.c.b16 %v557, %v556
    %v569 = vpack.c.b16 %v559, %v558
    %v570 = vpack.c.b16 %v561, %v560
    %v571 = vpack.c.b16 %v563, %v562
    %580 = vmatprep.subr.bf16.mxu0 0
    %581 = vmatpush1.bf16.msra.mxu0 %v564
    %582 = vmatprep.subr.bf16.mxu0 0
    %583 = vmatpush1.bf16.msra.mxu0 %v565
    %584 = vmatprep.subr.bf16.mxu0 0
    %585 = vmatpush1.bf16.msra.mxu0 %v566
    %586 = vmatprep.subr.bf16.mxu0 0
    %587 = vmatpush1.bf16.msra.mxu0 %v567
    %588 = vmatprep.subr.bf16.mxu0 0
    %589 = vmatpush1.bf16.msra.mxu0 %v568
    %590 = vmatprep.subr.bf16.mxu0 0
    %591 = vmatpush1.bf16.msra.mxu0 %v569
    %592 = vmatprep.subr.bf16.mxu0 0
    %593 = vmatpush1.bf16.msra.mxu0 %v570
    %594 = vmatprep.subr.bf16.mxu0 0
    %595 = vmatpush1.bf16.msra.mxu0 %v571
    %596 = vmatprep.subr.bf16.mxu0 0
    %597 = vmatpush1.bf16.msra.mxu0 0
    %598 = vmatprep.subr.bf16.mxu0 0
    %599 = vmatpush1.bf16.msra.mxu0 0
    %600 = vmatprep.subr.bf16.mxu0 0
    %601 = vmatpush1.bf16.msra.mxu0 0
    %602 = vmatprep.subr.bf16.mxu0 0
    %603 = vmatpush1.bf16.msra.mxu0 0
    %604 = vmatprep.subr.bf16.mxu0 0
    %605 = vmatpush1.bf16.msra.mxu0 0
    %606 = vmatprep.subr.bf16.mxu0 0
    %607 = vmatpush1.bf16.msra.mxu0 0
    %608 = vmatprep.subr.bf16.mxu0 0
    %609 = vmatpush1.bf16.msra.mxu0 0
    %610 = vmatprep.subr.bf16.mxu0 0
    %611 = vmatpush1.bf16.msra.mxu0 0
    %612 = vmatprep.mubr.bf16.mxu0 0
    %613 = vmatmul.mubr.bf16.gmra.mrb[0].mxu0 %v506
    %v614 = vpop.f32.mrb[0].mxu0
    %v615 = vadd.f32 %v530, %v614
    %v616 = vpop.f32.mrb[0].mxu0
    %v617 = vpop.f32.mrb[0].mxu0
    %v618 = vpop.f32.mrb[0].mxu0
    %619 = vdwg.mxu0
    %620 = vmax.xlane.f32.xlu0 %v615
    %v621 = vpop.xlane.xlu0 %620
    %v622 = vsub.f32 %v615, %v621
    %v623 = vmul.f32 %v622, 1.442695
    %v624 = vpow.pop %v623
    %625 = vadd.xlane.f32.xlu0 %v624
    %v626 = vpop.xlane.xlu0 %625
    %v627 = vlog2.pop %v626
    %v628 = vmul.f32 %v627, 0.6931472
    %v629 = vadd.f32 %v628, %v621
    %v630 = vsub.f32 %v615, %v629
    %631 = vst [vmem:[#allocation11] sm:$0xff] %v630
    // Predicated region
    $region46: #{tpu_custom_call.1} parent=1 // pred_check
      _
    $region47: #{tpu_custom_call.1} parent=1 // pred_check_branch
      %633 = sbr.rel (0) target = $region49
    $region48: #{tpu_custom_call.1} parent=1 // pred_region
      %s635 = ssub.s32 128, 128
      %636 = vsyncadd [#allocation5], %s635
      %s638 = sshll.u32 [#allocation11], 4
      %s639 = int_to_ptr.vmem [resolvable:$true] %s638
      %641 = dma.vmem_to_hbm [thread:$0]  %s639, 128, %s6, [#allocation5]
    $region49: #{tpu_custom_call.1} parent=1 // pred_fallthru
      _
    // Predicated region
    $region50: #{tpu_custom_call.1} parent=1 // pred_check
      _
    $region51: #{tpu_custom_call.1} parent=1 // pred_check_branch
      %643 = sbr.rel (0) target = $region53
    $region52: #{tpu_custom_call.1} parent=1 // pred_region
      %s645 = ssub.s32 128, 128
      %646 = vsyncadd [#allocation13], %s645
      %s648 = sshll.u32 [#allocation12], 4
      %s649 = int_to_ptr.vmem [resolvable:$true] %s648
      %651 = dma.vmem_to_hbm [thread:$0]  %s649, 128, %s7, [#allocation13]
    $region53: #{tpu_custom_call.1} parent=1 // pred_fallthru
      _
    // Predicated region
    $region54: #{tpu_custom_call.1} parent=1 // pred_check
      _
    $region55: #{tpu_custom_call.1} parent=1 // pred_check_branch
      %653 = sbr.rel (0) target = $region57
    $region56: #{tpu_custom_call.1} parent=1 // pred_region
      %654 = dma.done [#allocation5], 128
    $region57: #{tpu_custom_call.1} parent=1 // pred_fallthru
      _
    // Predicated region
    $region58: #{tpu_custom_call.1} parent=1 // pred_check
      _
    $region59: #{tpu_custom_call.1} parent=1 // pred_check_branch
      %656 = sbr.rel (0) target = $region61
    $region60: #{tpu_custom_call.1} parent=1 // pred_region
      %657 = dma.done [#allocation13], 128
    $region61: #{tpu_custom_call.1} parent=1 // pred_fallthru
      _
    %658 = vsyncpa [#allocation4], 1
    %659 = vsyncpa [#allocation7], 1
    %660 = vsyncpa [#allocation10], 1
    %661 = vsyncpa [#allocation5], 1
    %662 = vsyncpa [#allocation13], 1

</llo_original>
